<compile_context>
chip_gen: v7x
topology: tpu7x:2x2x1
jax: 0.10.0
libtpu: 0.0.40
codegen_flags: <defaults>
</compile_context>

<pallas_src>
import functools

import jax
import jax.numpy as jnp
from jax.experimental import pallas as pl
from jax.experimental.pallas import tpu as pltpu


# ----------------------------- kernels ------------------------------------ #

def _linear_row_kernel(x_ref, w_ref, b_ref, o_ref):
    x = x_ref[...]                      # (TILE_N, D) f32, streamed tile
    w = w_ref[...]                      # (1, D)      f32, resident across grid steps
    s = jnp.sum(x * w, axis=-1)         # VPU multiply + XLU lane reduction (GEMV)
    # Lane-dense writeback: (1, 1, TILE_N) row instead of a 1-lane column.
    o_ref[...] = (s + b_ref[0]).reshape(1, 1, -1).astype(o_ref.dtype)


def _linear_ktiled_kernel(x_ref, w_ref, b_ref, o_ref, acc_ref, *, d_total, tile_k):
    """Wide-D fallback: reduce over a K grid axis into a VMEM f32 accumulator."""
    k = pl.program_id(1)

    @pl.when(k == 0)
    def _init():
        acc_ref[...] = jnp.zeros_like(acc_ref)

    x = x_ref[...]                      # (TILE_N, TILE_K)
    w = w_ref[...]                      # (1, TILE_K)
    # Mask garbage columns of a partial last K block (they must not enter the sum).
    col = k * tile_k + jax.lax.broadcasted_iota(jnp.int32, x.shape, 1)
    prod = jnp.where(col < d_total, x * w, 0.0)
    acc_ref[...] += jnp.sum(prod, axis=-1).reshape(1, 1, -1)

    @pl.when(k == pl.num_programs(1) - 1)
    def _finalize():
        o_ref[...] = (acc_ref[...] + b_ref[0]).astype(o_ref.dtype)


# --------------------------- tiling policy --------------------------------- #

def _tpu_budgets():
    """Generation-aware (per-x-buffer budget, vmem_limit_bytes)."""
    try:
        vmem = pltpu.get_tpu_info().vmem_capacity_bytes
    except Exception:
        vmem = 128 * 1024 * 1024
    if vmem <= 64 * 1024 * 1024:                     # v7x-class: 64 MiB per TC
        return 16 * 1024 * 1024, 56 * 1024 * 1024    # double-buffered x => 32 MiB
    return 24 * 1024 * 1024, 96 * 1024 * 1024        # v5e/v6e: 128 MiB VMEM


def _choose_tiling(n, d, x_buf_budget, x_bytes=4):
    """Returns (tile_n, tile_k). tile_k is None for the plain row-tiled path."""
    if n >= 128:
        min_tile_n = 128
    else:
        min_tile_n = max(8, pl.cdiv(n, 8) * 8)       # one aligned tile covers all rows

    row_bytes = d * x_bytes
    # K-tiled fallback: even the minimal row tile exceeds the per-buffer budget.
    if min_tile_n * row_bytes > x_buf_budget:
        tile_n = min_tile_n
        tile_k = (x_buf_budget // (tile_n * x_bytes) // 128) * 128
        tile_k = max(128, tile_k)
        tile_k = min(tile_k, pl.cdiv(d, 128) * 128)
        return tile_n, tile_k

    # Plain row tiling, sized by DMA bytes (no arbitrary row cap).
    max_rows = x_buf_budget // row_bytes
    if n >= 256:
        # Keep >= 2 tiles so the ("parallel",) axis feeds both TCs on v7x.
        max_rows = min(max_rows, pl.cdiv(n, 2))
    tile_n = min(max_rows, n)
    if n >= 128:
        tile_n = max(128, (tile_n // 128) * 128)     # lane-dense, aligned tiles
    else:
        tile_n = min_tile_n
    return tile_n, None


# ------------------------------ wrapper ------------------------------------ #

@functools.partial(jax.jit, static_argnames=("tile_n", "tile_k", "vmem_limit"))
def _linear_forward_impl(x, w, b, *, tile_n, tile_k, vmem_limit):
    n, d = x.shape
    num_tiles = pl.cdiv(n, tile_n)
    cost = pl.CostEstimate(
        flops=2 * n * d,
        transcendentals=0,
        bytes_accessed=n * d * 4 + d * 4 + n * 4,
    )

    if tile_k is None:
        out = pl.pallas_call(
            _linear_row_kernel,
            out_shape=jax.ShapeDtypeStruct((num_tiles, 1, tile_n), x.dtype),
            grid_spec=pltpu.PrefetchScalarGridSpec(
                num_scalar_prefetch=0,
                grid=(num_tiles,),
                in_specs=[
                    pl.BlockSpec((tile_n, d), lambda i: (i, 0)),        # streamed x tile
                    pl.BlockSpec((1, d), lambda i: (0, 0)),             # resident weight row
                    pl.BlockSpec(memory_space=pltpu.MemorySpace.SMEM),  # scalar bias
                ],
                out_specs=pl.BlockSpec((1, 1, tile_n), lambda i: (i, 0, 0)),
            ),
            compiler_params=pltpu.CompilerParams(
                dimension_semantics=("parallel",),
                vmem_limit_bytes=vmem_limit,
            ),
            cost_estimate=cost,
        )(x, w, b)
    else:
        num_k = pl.cdiv(d, tile_k)
        kernel = functools.partial(_linear_ktiled_kernel, d_total=d, tile_k=tile_k)
        out = pl.pallas_call(
            kernel,
            out_shape=jax.ShapeDtypeStruct((num_tiles, 1, tile_n), x.dtype),
            grid_spec=pltpu.PrefetchScalarGridSpec(
                num_scalar_prefetch=0,
                grid=(num_tiles, num_k),
                in_specs=[
                    pl.BlockSpec((tile_n, tile_k), lambda i, k: (i, k)),
                    pl.BlockSpec((1, tile_k), lambda i, k: (0, k)),
                    pl.BlockSpec(memory_space=pltpu.MemorySpace.SMEM),
                ],
                out_specs=pl.BlockSpec((1, 1, tile_n), lambda i, k: (i, 0, 0)),
                scratch_shapes=[pltpu.VMEM((1, 1, tile_n), jnp.float32)],
            ),
            compiler_params=pltpu.CompilerParams(
                dimension_semantics=("parallel", "arbitrary"),
                vmem_limit_bytes=vmem_limit,
            ),
            cost_estimate=cost,
        )(x, w, b)

    # Rows of a partial last block are undefined, but they only land in output
    # elements discarded by this slice — keep it (no per-kernel cross-row reduce).
    return out.reshape(-1)[:n].reshape(n, 1)


def linear_forward(x, w, b, *, tile_n=None, tile_k=None):
    """y = x @ w.T + b, with w in torch layout (1, D) and b of shape (1,)."""
    n, d = x.shape
    x_buf_budget, vmem_limit = _tpu_budgets()
    auto_tn, auto_tk = _choose_tiling(n, d, x_buf_budget)
    if tile_n is None:
        tile_n = auto_tn
    if tile_k is None:
        tile_k = auto_tk
    return _linear_forward_impl(x, w, b, tile_n=tile_n, tile_k=tile_k,
                                vmem_limit=vmem_limit)


# TODO(synk): LinearModel.train (MSELoss + SGD loop) is host-side training logic,
# not part of the forward pass; only forward() is implemented as a kernel.
# TODO(synk): optional bf16 streaming of x (halves HBM bytes) left out to preserve
# f32 numerics of the reference module.


if __name__ == "__main__":
    key = jax.random.PRNGKey(0)
    kx, kw, kb, kx2, kx3, kw3 = jax.random.split(key, 6)

    # Small shapes consistent with the module: batch=8, input_dim=32.
    N, D = 8, 32
    x = jax.random.normal(kx, (N, D), dtype=jnp.float32)
    bound = 1.0 / (D ** 0.5)   # torch.nn.Linear default init range
    w = jax.random.uniform(kw, (1, D), jnp.float32, -bound, bound)   # (out, in)
    b = jax.random.uniform(kb, (1,), jnp.float32, -bound, bound)

    y = jax.block_until_ready(linear_forward(x, w, b))
    y_ref = x @ w.T + b.reshape(1, 1)
    assert y.shape == (N, 1)
    assert jnp.allclose(y, y_ref, atol=1e-5, rtol=1e-5)

    # Ragged N: exercises the pad-free partial last block (tile_n=128, 3 tiles).
    N2 = 300
    x2 = jax.random.normal(kx2, (N2, D), dtype=jnp.float32)
    y2 = jax.block_until_ready(linear_forward(x2, w, b))
    assert y2.shape == (N2, 1)
    assert jnp.allclose(y2, x2 @ w.T + b.reshape(1, 1), atol=1e-5, rtol=1e-5)

    # Forced K-tiled fallback with D not a multiple of tile_k (masked partial K block).
    N3, D3 = 40, 200
    x3 = jax.random.normal(kx3, (N3, D3), dtype=jnp.float32)
    w3 = jax.random.uniform(kw3, (1, D3), jnp.float32, -bound, bound)
    y3 = jax.block_until_ready(linear_forward(x3, w3, b, tile_n=40, tile_k=128))
    assert y3.shape == (N3, 1)
    assert jnp.allclose(y3, x3 @ w3.T + b.reshape(1, 1), atol=1e-4, rtol=1e-4)

    print("KERNEL_OK")
</pallas_src>

<mosaic_0001>
module attributes {stable_mosaic.version = 11 : i64} {
  func.func @_linear_row_kernel(%arg0: i32, %arg1: memref<8x32xf32, #tpu.memory_space<vmem>>, %arg2: memref<1x32xf32, #tpu.memory_space<vmem>>, %arg3: memref<1xf32, #tpu.memory_space<smem>>, %arg4: memref<1x1x8xf32, #tpu.memory_space<vmem>>) attributes {dimension_semantics = [#tpu.dimension_semantics<parallel>], iteration_bounds = array<i64: 1>, scalar_prefetch = 0 : i64, scratch_operands = 0 : i64, tpu.core_type = #tpu.core_type<tc>, window_params = [{transform_indices = @transform_0, window_bounds = array<i64: 8, 32>}, {pipeline_mode = #tpu.pipeline_mode<synchronous>, transform_indices = @transform_1, window_bounds = array<i64: 1, 32>}, {transform_indices = @transform_2, window_bounds = array<i64: 1>}, {transform_indices = @transform_3, window_bounds = array<i64: 1, 1, 8>}]} {
    %c0 = arith.constant 0 : index
    %c0_0 = arith.constant 0 : index
    %0 = vector.load %arg1[%c0, %c0_0] : memref<8x32xf32, #tpu.memory_space<vmem>>, vector<8x32xf32>
    %c0_1 = arith.constant 0 : index
    %c0_2 = arith.constant 0 : index
    %1 = vector.load %arg2[%c0_1, %c0_2] : memref<1x32xf32, #tpu.memory_space<vmem>>, vector<1x32xf32>
    %2 = vector.broadcast %1 : vector<1x32xf32> to vector<8x32xf32>
    %3 = arith.mulf %0, %2 : vector<8x32xf32>
    %cst = arith.constant dense<0.000000e+00> : vector<8xf32>
    %4 = vector.multi_reduction <add>, %3, %cst [1] : vector<8x32xf32> to vector<8xf32>
    %c0_3 = arith.constant 0 : index
    %5 = memref.load %arg3[%c0_3] : memref<1xf32, #tpu.memory_space<smem>>
    %6 = vector.broadcast %5 : f32 to vector<8xf32>
    %7 = arith.addf %4, %6 : vector<8xf32>
    %8 = vector.shape_cast %7 : vector<8xf32> to vector<1x1x8xf32>
    %c0_4 = arith.constant 0 : index
    %c0_5 = arith.constant 0 : index
    %c0_6 = arith.constant 0 : index
    %9 = vector.load %arg4[%c0_4, %c0_5, %c0_6] : memref<1x1x8xf32, #tpu.memory_space<vmem>>, vector<1x1x8xf32>
    tpu.vector_store %arg4[%c0_4, %c0_5, %c0_6], %8 {strides = array<i32>} : memref<1x1x8xf32, #tpu.memory_space<vmem>>, vector<1x1x8xf32>,
    return
  }
  func.func @transform_0(%arg0: i32) -> (i32, i32) {
    %c0_i32 = arith.constant 0 : i32
    %c0_i32_0 = arith.constant 0 : i32
    return %arg0, %c0_i32 : i32, i32
  }
  func.func @transform_1(%arg0: i32) -> (i32, i32) {
    %c0_i32 = arith.constant 0 : i32
    %c0_i32_0 = arith.constant 0 : i32
    %c0_i32_1 = arith.constant 0 : i32
    return %c0_i32, %c0_i32_0 : i32, i32
  }
  func.func @transform_2(%arg0: i32) -> i32 {
    %c0_i32 = arith.constant 0 : i32
    %c0_i32_0 = arith.constant 0 : i32
    return %c0_i32 : i32
  }
  func.func @transform_3(%arg0: i32) -> (i32, i32, i32) {
    %c0_i32 = arith.constant 0 : i32
    %c0_i32_0 = arith.constant 0 : i32
    %c0_i32_1 = arith.constant 0 : i32
    return %arg0, %c0_i32, %c0_i32_0 : i32, i32, i32
  }
}

</mosaic_0001>

<llo_original>
// kernel: _linear_forward_impl.1
$region0: #{_linear_forward_impl.1}
  #allocation0 [shape = 'u32[]', space=smem, size = 0x4, offset = 0x4, fixed_abs, tag = 'smem constant byte address 0x4 - core index']
  #allocation1 [shape = 'u32[144,128]{1,0:T(1,128)}', space=vmem, size = 0x12000, scoped, tag = 'internal scratch']
  #allocation2 [shape = 'f32[1]{0:T(128)S(6)}', space=smem, size = 0x200, scoped, tag = 'scoped memory for _linear_forward_impl.1']
  %s0 = inlined_call_operand.hbm [shape: f32[8,32], index: 0, kind: input, shape index: {}]
  %s1 = inlined_call_operand.hbm [shape: f32[1,32], index: 1, kind: input, shape index: {}]
  %s2 = inlined_call_operand.<no memory space> [shape: f32[1], index: 2, kind: input, shape index: {}]
  %s3 = inlined_call_operand.hbm [shape: f32[1,1,8], index: 3, kind: output, shape index: {}]
  %s4 = sld [smem:[#allocation0]]
  $region30: #{_linear_forward_impl.1} parent=0
    _
  %s6 = ssub.s32 1, %s4
  %s7 = scalar_select 0, %s6, %s4
  %8 = sst [smem:[#allocation2]] %s2
  $region1: #{_linear_forward_impl.1} parent=0
    #allocation3 [shape = 'u8[4096]{0}', space=vmem, size = 0x1000, scoped, tag = 'input window, operand 0, single buffered']
    #allocation4 [shape = 's32[1]{0}', space=sflag, size = 0x4, scoped, tag = 'scoped memory for _linear_forward_impl.1']
    #allocation5 [shape = 's32[1]{0}', space=sflag, size = 0x4, scoped, tag = 'scoped memory for _linear_forward_impl.1']
    #allocation6 [shape = 'u8[512]{0}', space=vmem, size = 0x400, scoped, tag = 'input window, operand 1, single buffered']
    #allocation7 [shape = 's32[1]{0}', space=sflag, size = 0x4, scoped, tag = 'scoped memory for _linear_forward_impl.1']
    #allocation8 [shape = 'u8[512]{0}', space=vmem, size = 0x400, scoped, tag = 'output window, operand 0, single buffered']
    %9 = vsyncpa [#allocation4], 0
    %10 = vsyncpa [#allocation7], 0
    %11 = vsyncpa [#allocation5], 0
    // Predicated region
    $region2: #{_linear_forward_impl.1} parent=1 // pred_check
      _
    $region3: #{_linear_forward_impl.1} parent=1 // pred_check_branch
      %13 = sbr.rel (0) target = $region5
    $region4: #{_linear_forward_impl.1} parent=1 // pred_region
      %s15 = ssub.s32 128, 128
      %16 = vsyncadd [#allocation4], %s15
      %s18 = sshll.u32 [#allocation3], 4
      %s19 = int_to_ptr.vmem [resolvable:$true] %s18
      %21 = dma.hbm_to_vmem [thread:$0]  %s0, 128, %s19, [#allocation4]
    $region5: #{_linear_forward_impl.1} parent=1 // pred_fallthru
      _
    // Predicated region
    $region6: #{_linear_forward_impl.1} parent=1 // pred_check
      _
    $region7: #{_linear_forward_impl.1} parent=1 // pred_check_branch
      %23 = sbr.rel (0) target = $region9
    $region8: #{_linear_forward_impl.1} parent=1 // pred_region
      %s25 = ssub.s32 16, 16
      %26 = vsyncadd [#allocation7], %s25
      %s28 = sshll.u32 [#allocation6], 4
      %s29 = int_to_ptr.vmem [resolvable:$true] %s28
      %31 = dma.hbm_to_vmem [thread:$0]  %s1, 16, %s29, [#allocation7]
    $region9: #{_linear_forward_impl.1} parent=1 // pred_fallthru
      _
    // Predicated region
    $region10: #{_linear_forward_impl.1} parent=1 // pred_check
      _
    $region11: #{_linear_forward_impl.1} parent=1 // pred_check_branch
      %33 = sbr.rel (0) target = $region13
    $region12: #{_linear_forward_impl.1} parent=1 // pred_region
      _
    $region13: #{_linear_forward_impl.1} parent=1 // pred_fallthru
      _
    // Predicated region
    $region14: #{_linear_forward_impl.1} parent=1 // pred_check
      _
    $region15: #{_linear_forward_impl.1} parent=1 // pred_check_branch
      %35 = sbr.rel (0) target = $region17
    $region16: #{_linear_forward_impl.1} parent=1 // pred_region
      %36 = dma.done [#allocation4], 128
    $region17: #{_linear_forward_impl.1} parent=1 // pred_fallthru
      _
    // Predicated region
    $region18: #{_linear_forward_impl.1} parent=1 // pred_check
      _
    $region19: #{_linear_forward_impl.1} parent=1 // pred_check_branch
      %38 = sbr.rel (0) target = $region21
    $region20: #{_linear_forward_impl.1} parent=1 // pred_region
      %39 = dma.done [#allocation7], 16
    $region21: #{_linear_forward_impl.1} parent=1 // pred_fallthru
      _
    %v40 = vld [vmem:[#allocation3] sm:$0xff]
    %v41 = vld [vmem:[#allocation6] sm:$0x1]
    %v43 = vlaneseq
    %v44 = vshrl.u32 %v43, 7
    %v45 = vsub.s32 0, %v44
    %v46 = vrot.slane %v41, %v45
    %v48 = vmul.f32 %v40, %v46
    %vm49 = vcmask 261120
    %v50 = vsel %vm49, %v48, 0.0
    %51 = vadd.xlane.f32.xlu0 %v50
    %v52 = vpop.xlane.xlu0 %51
    %s53 = sld [smem:[#allocation2]]
    %v54 = vstv %s53
    %v55 = vadd.f32 %v52, %v54
    %v57 = vlaneseq
    %v58 = vand.u32 %v57, 127
    %v59 = vlaneseq
    %v60 = vshrl.u32 %v59, 7
    %v61 = vsub.s32 %v58, %v60
    %v62 = vrot.slane %v55, %v61
    %vm64 = vcmask 57344
    %65 = vst.msk [vmem:[#allocation8] sm:$0x1] %vm64, %v62
    // Predicated region
    $region22: #{_linear_forward_impl.1} parent=1 // pred_check
      _
    $region23: #{_linear_forward_impl.1} parent=1 // pred_check_branch
      %67 = sbr.rel (0) target = $region25
    $region24: #{_linear_forward_impl.1} parent=1 // pred_region
      %s69 = ssub.s32 16, 16
      %70 = vsyncadd [#allocation5], %s69
      %s72 = sshll.u32 [#allocation8], 4
      %s73 = int_to_ptr.vmem [resolvable:$true] %s72
      %75 = dma.vmem_to_hbm [thread:$0]  %s73, 16, %s3, [#allocation5]
    $region25: #{_linear_forward_impl.1} parent=1 // pred_fallthru
      _
    // Predicated region
    $region26: #{_linear_forward_impl.1} parent=1 // pred_check
      _
    $region27: #{_linear_forward_impl.1} parent=1 // pred_check_branch
      %77 = sbr.rel (0) target = $region29
    $region28: #{_linear_forward_impl.1} parent=1 // pred_region
      %78 = dma.done [#allocation5], 16
    $region29: #{_linear_forward_impl.1} parent=1 // pred_fallthru
      _
    %79 = vsyncpa [#allocation4], 1
    %80 = vsyncpa [#allocation7], 1
    %81 = vsyncpa [#allocation5], 1

</llo_original>
